<compile_context>
chip_gen: v6e
topology: v6e:2x2x1
jax: 0.10.0
libtpu: 0.0.40
codegen_flags: <defaults>
</compile_context>

<pallas_src>
import functools
import math

import numpy as np
import jax
import jax.numpy as jnp
from jax.experimental import pallas as pl
from jax.experimental.pallas import tpu as pltpu


def _rup(a, m):
    return ((a + m - 1) // m) * m


def _isz(dt):
    return np.dtype(dt).itemsize


# --------------- parameter quantizers (STE forward semantics) ---------------

def wste_trans(w, K=8):
    """wSTE_Trans.forward: per-out-channel symmetric scale, round(w/scale)."""
    n_upper = 2 ** (K - 1) - 1
    n_lower = -n_upper - 1
    w_re = jnp.transpose(w, (1, 0, 2, 3)).reshape(w.shape[1], -1)
    scale = jnp.maximum(w_re.max(-1) / n_upper, w_re.min(-1) / n_lower)
    scale = jnp.maximum(scale - 1e-20, 0.0) + 1e-20
    return jnp.round(w / scale.reshape(1, -1, 1, 1))


def bste(b, K=8):
    """bSTE.forward: round(b * 2^K)."""
    return jnp.round(b * (2.0 ** K))


def cste(c, K=8):
    """cSTE.forward."""
    c_thd = math.sqrt(1.0 + 10.0 ** (-40))
    m = jnp.maximum(c - c_thd, 0.0) + c_thd
    r_c = m ** 2 - 10.0 ** (-40)
    return jnp.round(r_c * (2.0 ** K))


# --------------- sub-pixel (phase) decomposition bookkeeping -----------------

def _phase_tap_map(K, s, p):
    """For each output phase ph (= out_idx % s) and unified window offset t,
    the kernel-tap index it uses (or -1 if unused by that phase).

    out[s*oh + ph] = sum_t x[oh + d_min + t] * w[kidx[ph, t]]   (zeros outside)
    """
    e = [(ph + p) // s for ph in range(s)]
    r = [(ph + p) % s for ph in range(s)]
    J = [max(0, (K - r[ph] + s - 1) // s) for ph in range(s)]
    d_max = max(e)
    d_min = min(e[ph] - (J[ph] - 1) for ph in range(s))
    Kp = d_max - d_min + 1
    assert Kp >= 1
    kidx = np.full((s, Kp), -1, dtype=np.int64)
    for ph in range(s):
        for t in range(Kp):
            j = e[ph] - (d_min + t)
            if 0 <= j < J[ph]:
                kidx[ph, t] = r[ph] + s * j
    return kidx, d_min, d_max, Kp


def _build_weight_matrix(w_q, kidx_h, kidx_w, s):
    """Flatten (Cin, Cout, K, K) into the matmul LHS (s*s*Cout, Kp_h*Kp_w*Cin):
    rows ordered (ph, pw, co), columns ordered (th, tw, ci)."""
    Kp_h, Kp_w = kidx_h.shape[1], kidx_w.shape[1]
    Cin, Cout = w_q.shape[0], w_q.shape[1]
    kh = np.maximum(kidx_h, 0)                                   # (s, Kp_h)
    kw = np.maximum(kidx_w, 0)                                   # (s, Kp_w)
    valid = (kidx_h[:, :, None, None] >= 0) & (kidx_w[None, None, :, :] >= 0)
    # wg[ci, co, ph, th, pw, tw]
    wg = w_q[:, :, kh[:, :, None, None], kw[None, None, :, :]]
    wg = jnp.where(valid[None, None], wg, 0.0)
    wg = jnp.transpose(wg, (2, 4, 1, 3, 5, 0))                   # (ph,pw,co,th,tw,ci)
    return wg.reshape(s * s * Cout, Kp_h * Kp_w * Cin)


# ------------------------------- Pallas kernel -------------------------------

def _int_deconv_kernel(p_ref, w_ref, b_ref, d_ref, o_ref, *,
                       if_relu, use_trunc, upper):
    """One grid step: fused deconv-as-matmul + simulated-int divide (+ qrelu).

    p_ref : (1, CK, B*HWp)   bf16/f32  sub-pixel im2col patch (lane-dense)
    w_ref : (CO2p, CK)       bf16/f32  fused per-phase weight matrix
    b_ref : (CO2p, 1)        f32       quantized bias (+ trunc(c/2) folded in)
    d_ref : (CO2p, 1)        f32       divisor c (trunc path) or 1/c (float path)
    o_ref : (1, CO2p, B*HWp) bf16/f32  lane-dense output
    """
    # Single fused MXU contraction; bf16 x bf16 -> f32 accumulation.
    acc = jnp.dot(w_ref[...], p_ref[0], preferred_element_type=jnp.float32)

    acc = acc + b_ref[...]                       # per-channel, broadcast over lanes
    dv = d_ref[...]
    if use_trunc:
        # simulated integer divide (eval mode): trunc((a + trunc(c/2)) / c);
        # the +trunc(c/2) is already folded into b_ref -> only the exact divide
        # stays per-pixel (bit-exact integer-division semantics).
        y = jnp.trunc(acc / dv)
    else:
        # float-divide paths: dv = 1/c hoisted in the wrapper
        y = acc * dv

    if if_relu:
        y = jnp.round(jnp.clip(y, 0.0, upper))   # qrelu forward

    o_ref[0] = y.astype(o_ref.dtype)


# --------------------------------- wrapper -----------------------------------

def int_conv2d_trans(x_nchw, weight, bias, c, *, kernel=5, stride=2, padding=2,
                     output_padding=1, if_relu=True, if_fltdvd=False,
                     wBit=8, actBit=8, training=True, mm_dtype=jnp.bfloat16):
    """Forward of IntConv2dTrans.

    mm_dtype=jnp.bfloat16 is exact for quantized integer activations/weights
    (|w_q| <= 2^(wBit-1), post-qrelu acts <= 2^actBit-1 with wBit, actBit <= 8);
    pass jnp.float32 for bit-closer handling of raw-float training inputs.
    """
    K, s, p = kernel, stride, padding
    N, Cin, H, W = x_nchw.shape
    Cout = weight.shape[1]
    Ho = (H - 1) * s - 2 * p + K + output_padding
    Wo = (W - 1) * s - 2 * p + K + output_padding
    Hs = -(-Ho // s)                             # phase-grid height
    Ws = -(-Wo // s)                             # phase-grid width
    HW = Hs * Ws
    HWp = _rup(HW, 128)                          # lane-dense columns per image

    # --- quantize parameters (plain-JAX glue; matches the STE forwards) ---
    w_q = wste_trans(weight, wBit).astype(jnp.float32)     # (Cin, Cout, K, K)
    b_q = bste(bias, wBit).reshape(Cout).astype(jnp.float32)
    c_q = cste(c, wBit).reshape(Cout).astype(jnp.float32)

    # --- sub-pixel decomposition: per-phase tap maps + fused weight matrix ---
    kidx_h, dmin_h, dmax_h, Kp_h = _phase_tap_map(K, s, p)
    kidx_w, dmin_w, dmax_w, Kp_w = _phase_tap_map(K, s, p)

    CO2 = s * s * Cout
    CO2p = _rup(CO2, 8)                          # sublane pad only (not 128)
    CK = Kp_h * Kp_w * Cin

    w_mat = _build_weight_matrix(w_q, kidx_h, kidx_w, s)           # (CO2, CK)
    w_mat = jnp.pad(w_mat, ((0, CO2p - CO2), (0, 0))).astype(mm_dtype)

    b_col = jnp.pad(jnp.tile(b_q, s * s), (0, CO2p - CO2)).reshape(CO2p, 1)
    c_col = jnp.pad(jnp.tile(c_q, s * s), (0, CO2p - CO2),
                    constant_values=1.0).reshape(CO2p, 1)
    use_trunc = (not training) and (if_relu or not if_fltdvd)
    if use_trunc:
        b_col = b_col + jnp.trunc(c_col * 0.5)   # fold trunc(c/2) into the bias
        d_col = c_col                            # exact divide stays in-kernel
    else:
        d_col = 1.0 / c_col                      # hoisted reciprocal
    b_col = b_col.astype(jnp.float32)
    d_col = d_col.astype(jnp.float32)

    # --- output dtype: bf16 exact for qrelu integers <= 2^actBit-1 <= 255 ---
    out_dtype = jnp.bfloat16 if (if_relu and actBit <= 8) else jnp.float32
    x_b, o_b = _isz(mm_dtype), _isz(out_dtype)

    # --- batch tile folded into matmul lanes; sized for v7x's 64 MiB VMEM ---
    per_image = (2 * _rup(CK, 32 // x_b) * HWp * x_b   # patch block, x2 buffers
                 + 2 * CO2p * HWp * o_b)               # output block, x2 buffers
    fixed = (2 * _rup(CO2p, 32 // x_b) * _rup(CK, 128) * x_b   # weight block
             + 4 * CO2p * 128 * 4)                             # bias/divisor cols
    budget = 24 << 20                                  # v7x-friendly working set
    B = int(max(1, min(N, (budget - fixed) // max(per_image, 1))))
    G = -(-N // B)
    BHW = B * HWp
    vmem_limit = int(min(max(4 * (fixed + B * per_image), 16 << 20), 64 << 20))

    # --- small halo pad of the ORIGINAL image (no zero-dilated tensor) ---
    pad_t = max(0, -dmin_h)
    pad_l = max(0, -dmin_w)
    pad_b = max(0, Hs - 1 + dmax_h - (H - 1))
    pad_r = max(0, Ws - 1 + dmax_w - (W - 1))
    off_h = dmin_h + pad_t
    off_w = dmin_w + pad_l

    x = x_nchw.astype(mm_dtype)
    x_pad = jnp.pad(x, ((0, G * B - N), (0, 0), (pad_t, pad_b), (pad_l, pad_r)))

    # --- pre-gathered tap-major im2col (wrapper-side layout plumbing):
    #     rows (th, tw, ci); lane-dense columns (b, oh, ow). Only the
    #     ceil(K/s)^2 sub-pixel taps are gathered -- no zero pixels anywhere.
    taps = []
    for th in range(Kp_h):
        for tw in range(Kp_w):
            taps.append(x_pad[:, :, off_h + th: off_h + th + Hs,
                              off_w + tw: off_w + tw + Ws])
    patch = jnp.stack(taps, axis=1).reshape(G * B, CK, HW)
    patch = jnp.pad(patch, ((0, 0), (0, 0), (0, HWp - HW)))
    patch = patch.reshape(G, B, CK, HWp).transpose(0, 2, 1, 3).reshape(G, CK, BHW)

    kern = functools.partial(_int_deconv_kernel, if_relu=if_relu,
                             use_trunc=use_trunc, upper=float(2 ** actBit - 1))

    out = pl.pallas_call(
        kern,
        out_shape=jax.ShapeDtypeStruct((G, CO2p, BHW), out_dtype),
        grid_spec=pltpu.PrefetchScalarGridSpec(
            num_scalar_prefetch=0,
            grid=(G,),
            in_specs=[
                pl.BlockSpec((1, CK, BHW), lambda g: (g, 0, 0)),
                pl.BlockSpec((CO2p, CK), lambda g: (0, 0)),
                pl.BlockSpec((CO2p, 1), lambda g: (0, 0)),
                pl.BlockSpec((CO2p, 1), lambda g: (0, 0)),
            ],
            out_specs=pl.BlockSpec((1, CO2p, BHW), lambda g: (g, 0, 0)),
        ),
        compiler_params=pltpu.CompilerParams(
            dimension_semantics=("parallel",),
            vmem_limit_bytes=vmem_limit),
    )(patch, w_mat, b_col, d_col)

    # --- unfold batch tile + depth-to-space phase interleave back to NCHW ---
    out = out.reshape(G, CO2p, B, HWp)[:, :CO2, :, :HW]
    out = jnp.transpose(out, (0, 2, 1, 3)).reshape(G * B, CO2, HW)[:N]
    out = out.astype(jnp.float32).reshape(N, s, s, Cout, Hs, Ws)
    out = jnp.transpose(out, (0, 3, 4, 1, 5, 2)).reshape(N, Cout, Hs * s, Ws * s)
    return out[:, :, :Ho, :Wo]


# ----------------------------- plain-JAX reference ---------------------------

def _ref_forward(x, weight, bias, c, *, kernel, stride, padding, output_padding,
                 if_relu, if_fltdvd, wBit, actBit, training):
    K, s, p, op = kernel, stride, padding, output_padding
    w_q = wste_trans(weight, wBit)
    b_q = bste(bias, wBit)
    c_q = cste(c, wBit)                                   # (1, Cout, 1, 1)
    w_conv = jnp.transpose(w_q, (1, 0, 2, 3))[:, :, ::-1, ::-1]
    y = jax.lax.conv_general_dilated(
        x, w_conv, window_strides=(1, 1),
        padding=[(K - 1 - p, K - 1 - p + op)] * 2,
        lhs_dilation=(s, s),
        dimension_numbers=('NCHW', 'OIHW', 'NCHW'))
    y = y + b_q.reshape(1, -1, 1, 1)
    float_div = training or (if_fltdvd and not if_relu)
    if float_div:
        z = y / c_q
    else:
        z = jnp.trunc((y + jnp.trunc(c_q / 2)) / c_q)
    if if_relu:
        z = jnp.round(jnp.clip(z, 0.0, float(2 ** actBit - 1)))
    return z


if __name__ == "__main__":
    key = jax.random.PRNGKey(0)
    N, Cin, H, W = 2, 4, 16, 16
    Cout, K = 8, 5

    k1, k2, k3 = jax.random.split(key, 3)
    x = jax.random.normal(k1, (N, Cin, H, W), dtype=jnp.float32)
    # nn.ConvTranspose2d weight: (in_channels, out_channels, k, k); bias: (out,)
    weight = jax.random.normal(k2, (Cin, Cout, K, K), dtype=jnp.float32) * 0.1
    bias = jax.random.normal(k3, (Cout,), dtype=jnp.float32) * 0.1
    # self.c initialized to constant 2.0, shape (1, out_channel, 1, 1)
    c = jnp.full((1, Cout, 1, 1), 2.0, dtype=jnp.float32)

    configs = [
        dict(if_relu=True, if_fltdvd=False, training=True),    # default module
        dict(if_relu=True, if_fltdvd=False, training=False),   # eval trunc-div
        dict(if_relu=False, if_fltdvd=True, training=False),   # pure float-div
        dict(if_relu=False, if_fltdvd=False, training=False),  # trunc, no relu
    ]

    for cfg in configs:
        out = int_conv2d_trans(x, weight, bias, c, kernel=K, stride=2,
                               padding=2, output_padding=1, wBit=8, actBit=8,
                               **cfg)
        out = jax.block_until_ready(out)
        assert out.shape == (N, Cout, 2 * H, 2 * W), out.shape

        ref = _ref_forward(x, weight, bias, c, kernel=K, stride=2, padding=2,
                           output_padding=1, wBit=8, actBit=8, **cfg)
        use_trunc = (not cfg["training"]) and (cfg["if_relu"] or not cfg["if_fltdvd"])
        if cfg["if_relu"] or use_trunc:
            # integer-valued outputs: allow rare off-by-one flips at rounding /
            # trunc boundaries caused by the bf16 MXU path and accumulation
            # order differences.
            frac_bad = float(jnp.mean((jnp.abs(out - ref) > 0.5).astype(jnp.float32)))
            assert frac_bad < 0.05, (cfg, frac_bad)
        else:
            tol = 0.05 * (1.0 + float(jnp.max(jnp.abs(ref))))
            err = float(jnp.max(jnp.abs(out - ref)))
            assert err < tol, (cfg, err, tol)

    print("KERNEL_OK")
</pallas_src>

<mosaic_0001>
module attributes {stable_mosaic.version = 11 : i64} {
  func.func @_int_deconv_kernel(%arg0: i32, %arg1: memref<1x36x512xbf16, #tpu.memory_space<vmem>>, %arg2: memref<32x36xbf16, #tpu.memory_space<vmem>>, %arg3: memref<32x1xf32, #tpu.memory_space<vmem>>, %arg4: memref<32x1xf32, #tpu.memory_space<vmem>>, %arg5: memref<1x32x512xbf16, #tpu.memory_space<vmem>>) attributes {dimension_semantics = [#tpu.dimension_semantics<parallel>], iteration_bounds = array<i64: 1>, scalar_prefetch = 0 : i64, scratch_operands = 0 : i64, tpu.core_type = #tpu.core_type<tc>, window_params = [{transform_indices = @transform_0, window_bounds = array<i64: 1, 36, 512>}, {pipeline_mode = #tpu.pipeline_mode<synchronous>, transform_indices = @transform_1, window_bounds = array<i64: 32, 36>}, {pipeline_mode = #tpu.pipeline_mode<synchronous>, transform_indices = @transform_2, window_bounds = array<i64: 32, 1>}, {pipeline_mode = #tpu.pipeline_mode<synchronous>, transform_indices = @transform_3, window_bounds = array<i64: 32, 1>}, {transform_indices = @transform_4, window_bounds = array<i64: 1, 32, 512>}]} {
    %c0 = arith.constant 0 : index
    %c0_0 = arith.constant 0 : index
    %0 = vector.load %arg2[%c0, %c0_0] : memref<32x36xbf16, #tpu.memory_space<vmem>>, vector<32x36xbf16>
    %c0_1 = arith.constant 0 : index
    %c0_2 = arith.constant 0 : index
    %c0_3 = arith.constant 0 : index
    %1 = vector.load %arg1[%c0_1, %c0_2, %c0_3] : memref<1x36x512xbf16, #tpu.memory_space<vmem>>, vector<1x36x512xbf16>
    %2 = vector.shape_cast %1 : vector<1x36x512xbf16> to vector<36x512xbf16>
    %cst = arith.constant dense<0.000000e+00> : vector<32x512xf32>
    %3 = tpu.matmul %0, %2, %cst {dimension_numbers = #tpu.dot_dimension_numbers<[1], [0], [0], [1], [0, 0, 1, 1], [], []>} : vector<32x36xbf16>, vector<36x512xbf16>, vector<32x512xf32> -> vector<32x512xf32>
    %c0_4 = arith.constant 0 : index
    %c0_5 = arith.constant 0 : index
    %4 = vector.load %arg3[%c0_4, %c0_5] : memref<32x1xf32, #tpu.memory_space<vmem>>, vector<32x1xf32>
    %5 = vector.broadcast %4 : vector<32x1xf32> to vector<32x512xf32>
    %6 = arith.addf %3, %5 : vector<32x512xf32>
    %c0_6 = arith.constant 0 : index
    %c0_7 = arith.constant 0 : index
    %7 = vector.load %arg4[%c0_6, %c0_7] : memref<32x1xf32, #tpu.memory_space<vmem>>, vector<32x1xf32>
    %8 = vector.broadcast %7 : vector<32x1xf32> to vector<32x512xf32>
    %9 = arith.mulf %6, %8 : vector<32x512xf32>
    %cst_8 = arith.constant 0.000000e+00 : f32
    %cst_9 = arith.constant 2.550000e+02 : f32
    %10 = vector.broadcast %cst_8 : f32 to vector<32x512xf32>
    %11 = arith.maximumf %10, %9 : vector<32x512xf32>
    %12 = vector.broadcast %cst_9 : f32 to vector<32x512xf32>
    %13 = arith.minimumf %12, %11 : vector<32x512xf32>
    %14 = math.roundeven %13 : vector<32x512xf32>
    %15 = arith.truncf %14 : vector<32x512xf32> to vector<32x512xbf16>
    %c0_10 = arith.constant 0 : index
    %c0_11 = arith.constant 0 : index
    %c0_12 = arith.constant 0 : index
    %16 = vector.load %arg5[%c0_10, %c0_11, %c0_12] : memref<1x32x512xbf16, #tpu.memory_space<vmem>>, vector<1x32x512xbf16>
    %17 = vector.shape_cast %16 : vector<1x32x512xbf16> to vector<32x512xbf16>
    %18 = vector.shape_cast %15 : vector<32x512xbf16> to vector<1x32x512xbf16>
    tpu.vector_store %arg5[%c0_10, %c0_11, %c0_12], %18 {strides = array<i32>} : memref<1x32x512xbf16, #tpu.memory_space<vmem>>, vector<1x32x512xbf16>,
    return
  }
  func.func @transform_0(%arg0: i32) -> (i32, i32, i32) {
    %c0_i32 = arith.constant 0 : i32
    %c0_i32_0 = arith.constant 0 : i32
    %c0_i32_1 = arith.constant 0 : i32
    return %arg0, %c0_i32, %c0_i32_0 : i32, i32, i32
  }
  func.func @transform_1(%arg0: i32) -> (i32, i32) {
    %c0_i32 = arith.constant 0 : i32
    %c0_i32_0 = arith.constant 0 : i32
    %c0_i32_1 = arith.constant 0 : i32
    return %c0_i32, %c0_i32_0 : i32, i32
  }
  func.func @transform_2(%arg0: i32) -> (i32, i32) {
    %c0_i32 = arith.constant 0 : i32
    %c0_i32_0 = arith.constant 0 : i32
    %c0_i32_1 = arith.constant 0 : i32
    return %c0_i32, %c0_i32_0 : i32, i32
  }
  func.func @transform_3(%arg0: i32) -> (i32, i32) {
    %c0_i32 = arith.constant 0 : i32
    %c0_i32_0 = arith.constant 0 : i32
    %c0_i32_1 = arith.constant 0 : i32
    return %c0_i32, %c0_i32_0 : i32, i32
  }
  func.func @transform_4(%arg0: i32) -> (i32, i32, i32) {
    %c0_i32 = arith.constant 0 : i32
    %c0_i32_0 = arith.constant 0 : i32
    %c0_i32_1 = arith.constant 0 : i32
    return %arg0, %c0_i32, %c0_i32_0 : i32, i32, i32
  }
}

</mosaic_0001>

<llo_original>
// kernel: tpu_custom_call.1
$region0: #{tpu_custom_call.1}
  #allocation0 [shape = 'u32[]', space=smem, size = 0x4, offset = 0x4, fixed_abs, tag = 'smem constant byte address 0x4 - core index']
  #allocation1 [shape = 'u32[144,128]{1,0:T(1,128)}', space=vmem, size = 0x12000, scoped, tag = 'internal scratch']
  %s0 = inlined_call_operand.hbm [shape: bf16[1,36,512], index: 0, kind: input, shape index: {}]
  %s1 = inlined_call_operand.vmem [shape: bf16[32,36], index: 1, kind: input, shape index: {}]
  %s2 = inlined_call_operand.vmem [shape: f32[32,1], index: 2, kind: input, shape index: {}]
  %s3 = inlined_call_operand.vmem [shape: f32[32,1], index: 3, kind: input, shape index: {}]
  %s4 = inlined_call_operand.hbm [shape: bf16[1,32,512], index: 4, kind: output, shape index: {}]
  %s5 = sld [smem:[#allocation0]]
  $region30: #{tpu_custom_call.1} parent=0
    _
  %s7 = ssub.s32 1, %s5
  %s8 = scalar_select 0, %s7, %s5
  $region1: #{tpu_custom_call.1} parent=0
    #allocation2 [shape = 'u8[40960]{0}', space=vmem, size = 0xa000, scoped, tag = 'input window, operand 0, single buffered']
    #allocation3 [shape = 's32[1]{0}', space=sflag, size = 0x4, scoped, tag = 'scoped memory for tpu_custom_call.1']
    #allocation4 [shape = 's32[1]{0}', space=sflag, size = 0x4, scoped, tag = 'scoped memory for tpu_custom_call.1']
    #allocation5 [shape = 'u8[32768]{0}', space=vmem, size = 0x8000, scoped, tag = 'output window, operand 0, single buffered']
    %9 = vsyncpa [#allocation3], 0
    %10 = vsyncpa [#allocation4], 0
    // Predicated region
    $region2: #{tpu_custom_call.1} parent=1 // pred_check
      _
    $region3: #{tpu_custom_call.1} parent=1 // pred_check_branch
      %12 = sbr.rel (0) target = $region5
    $region4: #{tpu_custom_call.1} parent=1 // pred_region
      %s14 = ssub.s32 1280, 1280
      %15 = vsyncadd [#allocation3], %s14
      %s16 = sshll.u32 [#allocation2], 4
      %s17 = int_to_ptr.vmem [resolvable:$true] %s16
      %22 = dma.hbm_to_vmem [thread:$0]  %s0, 1280, %s17, [#allocation3], 256, 256, 16
    $region5: #{tpu_custom_call.1} parent=1 // pred_fallthru
      _
    // Predicated region
    $region6: #{tpu_custom_call.1} parent=1 // pred_check
      _
    $region7: #{tpu_custom_call.1} parent=1 // pred_check_branch
      %24 = sbr.rel (0) target = $region9
    $region8: #{tpu_custom_call.1} parent=1 // pred_region
      _
    $region9: #{tpu_custom_call.1} parent=1 // pred_fallthru
      _
    // Predicated region
    $region10: #{tpu_custom_call.1} parent=1 // pred_check
      _
    $region11: #{tpu_custom_call.1} parent=1 // pred_check_branch
      %26 = sbr.rel (0) target = $region13
    $region12: #{tpu_custom_call.1} parent=1 // pred_region
      _
    $region13: #{tpu_custom_call.1} parent=1 // pred_fallthru
      _
    // Predicated region
    $region14: #{tpu_custom_call.1} parent=1 // pred_check
      _
    $region15: #{tpu_custom_call.1} parent=1 // pred_check_branch
      %28 = sbr.rel (0) target = $region17
    $region16: #{tpu_custom_call.1} parent=1 // pred_region
      _
    $region17: #{tpu_custom_call.1} parent=1 // pred_fallthru
      _
    // Predicated region
    $region18: #{tpu_custom_call.1} parent=1 // pred_check
      _
    $region19: #{tpu_custom_call.1} parent=1 // pred_check_branch
      %30 = sbr.rel (0) target = $region21
    $region20: #{tpu_custom_call.1} parent=1 // pred_region
      %31 = dma.done [#allocation3], 1280
    $region21: #{tpu_custom_call.1} parent=1 // pred_fallthru
      _
    %v33 = vld [vmem:[%s1] sm:$0xf]
    %v34 = vld [vmem:[%s1 + $0x4] sm:$0xf]
    %v35 = vld [vmem:[%s1 + $0x8] sm:$0xf]
    %v36 = vld [vmem:[%s1 + $0xc] sm:$0xf]
    %v37 = vld [vmem:[#allocation2] sm:$0xff]
    %v38 = vld [vmem:[#allocation2 + $0x8] sm:$0xff]
    %v39 = vld [vmem:[#allocation2 + $0x10] sm:$0xff]
    %v40 = vld [vmem:[#allocation2 + $0x18] sm:$0xff]
    %v41 = vld [vmem:[#allocation2 + $0x20] sm:$0xff]
    %v42 = vld [vmem:[#allocation2 + $0x28] sm:$0xff]
    %v43 = vld [vmem:[#allocation2 + $0x30] sm:$0xff]
    %v44 = vld [vmem:[#allocation2 + $0x38] sm:$0xff]
    %v45 = vld [vmem:[#allocation2 + $0x40] sm:$0x33]
    %v46 = vld [vmem:[#allocation2 + $0x48] sm:$0x33]
    %v47 = vld [vmem:[%s2] sm:$0xff]
    %v48 = vld [vmem:[%s2 + $0x8] sm:$0xff]
    %v49 = vld [vmem:[%s2 + $0x10] sm:$0xff]
    %v50 = vld [vmem:[%s2 + $0x18] sm:$0xff]
    %52 = vset.pattern.permute.xlu0 0
    %53 = vperm.xlu0 %52, %v47
    %v54 = vpop.permute.xlu0 %53
    %57 = vset.pattern.permute.xlu0 0
    %58 = vperm.xlu0 %57, %v48
    %v59 = vpop.permute.xlu0 %58
    %62 = vset.pattern.permute.xlu0 0
    %63 = vperm.xlu0 %62, %v49
    %v64 = vpop.permute.xlu0 %63
    %67 = vset.pattern.permute.xlu0 0
    %68 = vperm.xlu0 %67, %v50
    %v69 = vpop.permute.xlu0 %68
    %v75 = vunpack.c.l.b16 %v33
    %v76 = vunpack.c.l.b16 %v34
    %v77 = vunpack.c.l.b16 %v35
    %v78 = vunpack.c.l.b16 %v36
    %v79 = vpack.c.b16 %v76, %v75
    %v80 = vpack.c.b16 %v78, %v77
    %v91 = vunpack.c.l.b16 %v37
    %v92 = vunpack.c.h.b16 %v37
    %v93 = vunpack.c.l.b16 %v38
    %v94 = vunpack.c.h.b16 %v38
    %v95 = vunpack.c.l.b16 %v39
    %v96 = vunpack.c.h.b16 %v39
    %v97 = vunpack.c.l.b16 %v40
    %v98 = vunpack.c.h.b16 %v40
    %v99 = vunpack.c.l.b16 %v41
    %v100 = vunpack.c.h.b16 %v41
    %v101 = vunpack.c.l.b16 %v42
    %v102 = vunpack.c.h.b16 %v42
    %v103 = vunpack.c.l.b16 %v43
    %v104 = vunpack.c.h.b16 %v43
    %v105 = vunpack.c.l.b16 %v44
    %v106 = vunpack.c.h.b16 %v44
    %v107 = vunpack.c.l.b16 %v45
    %v108 = vunpack.c.h.b16 %v45
    %v109 = vunpack.c.l.b16 %v46
    %v110 = vunpack.c.h.b16 %v46
    %v111 = vpack.c.b16 %v95, %v91
    %v112 = vpack.c.b16 %v96, %v92
    %v113 = vpack.c.b16 %v97, %v93
    %v114 = vpack.c.b16 %v98, %v94
    %v115 = vpack.c.b16 %v103, %v99
    %v116 = vpack.c.b16 %v104, %v100
    %v117 = vpack.c.b16 %v105, %v101
    %v118 = vpack.c.b16 %v106, %v102
    %v119 = vpack.c.b16 %v107, %v107
    %v120 = vpack.c.b16 %v108, %v108
    %v121 = vpack.c.b16 %v109, %v109
    %v122 = vpack.c.b16 %v110, %v110
    %vm131 = vcmask 293888
    %v133 = vsel %vm131, %v79, 0
    %v136 = vsel %vm131, %v80, 0
    %vm138 = vcmask 1041408
    %v140 = vsel %vm138, %v119, 0
    %v143 = vsel %vm138, %v120, 0
    %v146 = vsel %vm138, %v121, 0
    %v149 = vsel %vm138, %v122, 0
    %151 = vmatprep.subr.bf16.mxu0 0
    %152 = vmatpush1.bf16.msra.mxu0 0
    %153 = vmatprep.subr.bf16.mxu0 0
    %154 = vmatpush1.bf16.msra.mxu0 0
    %155 = vmatprep.subr.bf16.mxu0 0
    %156 = vmatpush1.bf16.msra.mxu0 0
    %157 = vmatprep.subr.bf16.mxu0 0
    %158 = vmatpush1.bf16.msra.mxu0 0
    %159 = vmatprep.subr.bf16.mxu0 0
    %160 = vmatpush1.bf16.msra.mxu0 0
    %161 = vmatprep.subr.bf16.mxu0 %v143
    %162 = vmatpush1.bf16.msra.mxu0 %v140
    %163 = vmatprep.subr.bf16.mxu0 %v116
    %164 = vmatpush1.bf16.msra.mxu0 %v115
    %165 = vmatprep.subr.bf16.mxu0 %v112
    %166 = vmatpush1.bf16.msra.mxu0 %v111
    %167 = vmatprep.subr.bf16.mxu0 0
    %168 = vmatpush2.bf16.msra.mxu0 0
    %169 = vmatprep.subr.bf16.mxu0 0
    %170 = vmatpush2.bf16.msra.mxu0 0
    %171 = vmatprep.subr.bf16.mxu0 0
    %172 = vmatpush2.bf16.msra.mxu0 0
    %173 = vmatprep.subr.bf16.mxu0 0
    %174 = vmatpush2.bf16.msra.mxu0 0
    %175 = vmatprep.subr.bf16.mxu0 0
    %176 = vmatpush2.bf16.msra.mxu0 0
    %177 = vmatprep.subr.bf16.mxu0 0
    %178 = vmatpush2.bf16.msra.mxu0 0
    %179 = vmatprep.subr.bf16.mxu0 0
    %180 = vmatpush2.bf16.msra.mxu0 0
    %181 = vmatprep.subr.bf16.mxu0 0
    %182 = vmatpush2.bf16.msra.mxu0 0
    %183 = vmatprep.mubr.bf16.mxu0 0
    %184 = vmatmul.mubr.bf16.gmra.mxu0 %v133
    %v185 = vpop.f32.mrf.mxu0
    %v186 = vadd.f32 %v54, %v185
    %v187 = vpop.f32.mrf.mxu0
    %v188 = vadd.f32 %v54, %v187
    %v189 = vpop.f32.mrf.mxu0
    %v190 = vadd.f32 %v59, %v189
    %v191 = vpop.f32.mrf.mxu0
    %v192 = vadd.f32 %v59, %v191
    %193 = vmatprep.mubr.bf16.mxu0 0
    %194 = vmatmul.mubr.bf16.gmra.mxu0 %v136
    %v195 = vpop.f32.mrf.mxu0
    %v196 = vadd.f32 %v64, %v195
    %v197 = vpop.f32.mrf.mxu0
    %v198 = vadd.f32 %v64, %v197
    %v199 = vpop.f32.mrf.mxu0
    %v200 = vadd.f32 %v69, %v199
    %v201 = vpop.f32.mrf.mxu0
    %v202 = vadd.f32 %v69, %v201
    %203 = vdwg.mxu0
    %204 = vmatprep.subr.bf16.mxu0 0
    %205 = vmatpush1.bf16.msra.mxu0 0
    %206 = vmatprep.subr.bf16.mxu0 0
    %207 = vmatpush1.bf16.msra.mxu0 0
    %208 = vmatprep.subr.bf16.mxu0 0
    %209 = vmatpush1.bf16.msra.mxu0 0
    %210 = vmatprep.subr.bf16.mxu0 0
    %211 = vmatpush1.bf16.msra.mxu0 0
    %212 = vmatprep.subr.bf16.mxu0 0
    %213 = vmatpush1.bf16.msra.mxu0 0
    %214 = vmatprep.subr.bf16.mxu0 %v149
    %215 = vmatpush1.bf16.msra.mxu0 %v146
    %216 = vmatprep.subr.bf16.mxu0 %v118
    %217 = vmatpush1.bf16.msra.mxu0 %v117
    %218 = vmatprep.subr.bf16.mxu0 %v114
    %219 = vmatpush1.bf16.msra.mxu0 %v113
    %220 = vmatprep.subr.bf16.mxu0 0
    %221 = vmatpush2.bf16.msra.mxu0 0
    %222 = vmatprep.subr.bf16.mxu0 0
    %223 = vmatpush2.bf16.msra.mxu0 0
    %224 = vmatprep.subr.bf16.mxu0 0
    %225 = vmatpush2.bf16.msra.mxu0 0
    %226 = vmatprep.subr.bf16.mxu0 0
    %227 = vmatpush2.bf16.msra.mxu0 0
    %228 = vmatprep.subr.bf16.mxu0 0
    %229 = vmatpush2.bf16.msra.mxu0 0
    %230 = vmatprep.subr.bf16.mxu0 0
    %231 = vmatpush2.bf16.msra.mxu0 0
    %232 = vmatprep.subr.bf16.mxu0 0
    %233 = vmatpush2.bf16.msra.mxu0 0
    %234 = vmatprep.subr.bf16.mxu0 0
    %235 = vmatpush2.bf16.msra.mxu0 0
    %236 = vmatprep.mubr.bf16.mxu0 0
    %237 = vmatmul.mubr.bf16.gmra.mxu0 %v133
    %v238 = vpop.f32.mrf.mxu0
    %v239 = vadd.f32 %v54, %v238
    %v240 = vpop.f32.mrf.mxu0
    %v241 = vadd.f32 %v54, %v240
    %v242 = vpop.f32.mrf.mxu0
    %v243 = vadd.f32 %v59, %v242
    %v244 = vpop.f32.mrf.mxu0
    %v245 = vadd.f32 %v59, %v244
    %246 = vmatprep.mubr.bf16.mxu0 0
    %247 = vmatmul.mubr.bf16.gmra.mxu0 %v136
    %v248 = vpop.f32.mrf.mxu0
    %v249 = vadd.f32 %v64, %v248
    %v250 = vpop.f32.mrf.mxu0
    %v251 = vadd.f32 %v64, %v250
    %v252 = vpop.f32.mrf.mxu0
    %v253 = vadd.f32 %v69, %v252
    %v254 = vpop.f32.mrf.mxu0
    %v255 = vadd.f32 %v69, %v254
    %256 = vdwg.mxu0
    %v257 = vld [vmem:[%s3] sm:$0xff]
    %v258 = vld [vmem:[%s3 + $0x8] sm:$0xff]
    %v259 = vld [vmem:[%s3 + $0x10] sm:$0xff]
    %v260 = vld [vmem:[%s3 + $0x18] sm:$0xff]
    %262 = vset.pattern.permute.xlu0 0
    %263 = vperm.xlu0 %262, %v257
    %v264 = vpop.permute.xlu0 %263
    %267 = vset.pattern.permute.xlu0 0
    %268 = vperm.xlu0 %267, %v258
    %v269 = vpop.permute.xlu0 %268
    %272 = vset.pattern.permute.xlu0 0
    %273 = vperm.xlu0 %272, %v259
    %v274 = vpop.permute.xlu0 %273
    %277 = vset.pattern.permute.xlu0 0
    %278 = vperm.xlu0 %277, %v260
    %v279 = vpop.permute.xlu0 %278
    %v281 = vmul.f32 %v186, %v264
    %v282 = vmul.f32 %v188, %v264
    %v283 = vmul.f32 %v239, %v264
    %v284 = vmul.f32 %v241, %v264
    %v285 = vmul.f32 %v190, %v269
    %v286 = vmul.f32 %v192, %v269
    %v287 = vmul.f32 %v243, %v269
    %v288 = vmul.f32 %v245, %v269
    %v289 = vmul.f32 %v196, %v274
    %v290 = vmul.f32 %v198, %v274
    %v291 = vmul.f32 %v249, %v274
    %v292 = vmul.f32 %v251, %v274
    %v293 = vmul.f32 %v200, %v279
    %v294 = vmul.f32 %v202, %v279
    %v295 = vmul.f32 %v253, %v279
    %v296 = vmul.f32 %v255, %v279
    %v297 = vmax.f32 %v281, 0.0
    %v298 = vmax.f32 %v282, 0.0
    %v299 = vmax.f32 %v283, 0.0
    %v300 = vmax.f32 %v284, 0.0
    %v301 = vmax.f32 %v285, 0.0
    %v302 = vmax.f32 %v286, 0.0
    %v303 = vmax.f32 %v287, 0.0
    %v304 = vmax.f32 %v288, 0.0
    %v305 = vmax.f32 %v289, 0.0
    %v306 = vmax.f32 %v290, 0.0
    %v307 = vmax.f32 %v291, 0.0
    %v308 = vmax.f32 %v292, 0.0
    %v309 = vmax.f32 %v293, 0.0
    %v310 = vmax.f32 %v294, 0.0
    %v311 = vmax.f32 %v295, 0.0
    %v312 = vmax.f32 %v296, 0.0
    %v313 = vmin.f32 %v297, 255.0
    %v314 = vmin.f32 %v298, 255.0
    %v315 = vmin.f32 %v299, 255.0
    %v316 = vmin.f32 %v300, 255.0
    %v317 = vmin.f32 %v301, 255.0
    %v318 = vmin.f32 %v302, 255.0
    %v319 = vmin.f32 %v303, 255.0
    %v320 = vmin.f32 %v304, 255.0
    %v321 = vmin.f32 %v305, 255.0
    %v322 = vmin.f32 %v306, 255.0
    %v323 = vmin.f32 %v307, 255.0
    %v324 = vmin.f32 %v308, 255.0
    %v325 = vmin.f32 %v309, 255.0
    %v326 = vmin.f32 %v310, 255.0
    %v327 = vmin.f32 %v311, 255.0
    %v328 = vmin.f32 %v312, 255.0
    %v329 = vround.ne.pseudo %v313
    %v330 = vround.ne.pseudo %v314
    %v331 = vround.ne.pseudo %v315
    %v332 = vround.ne.pseudo %v316
    %v333 = vround.ne.pseudo %v317
    %v334 = vround.ne.pseudo %v318
    %v335 = vround.ne.pseudo %v319
    %v336 = vround.ne.pseudo %v320
    %v337 = vround.ne.pseudo %v321
    %v338 = vround.ne.pseudo %v322
    %v339 = vround.ne.pseudo %v323
    %v340 = vround.ne.pseudo %v324
    %v341 = vround.ne.pseudo %v325
    %v342 = vround.ne.pseudo %v326
    %v343 = vround.ne.pseudo %v327
    %v344 = vround.ne.pseudo %v328
    %v345 = vpack.c.bf16 %v333, %v329
    %v346 = vpack.c.bf16 %v334, %v330
    %v347 = vpack.c.bf16 %v335, %v331
    %v348 = vpack.c.bf16 %v336, %v332
    %v349 = vpack.c.bf16 %v341, %v337
    %v350 = vpack.c.bf16 %v342, %v338
    %v351 = vpack.c.bf16 %v343, %v339
    %v352 = vpack.c.bf16 %v344, %v340
    %v361 = vunpack.c.l.b16 %v345
    %v362 = vunpack.c.l.b16 %v346
    %v363 = vunpack.c.l.b16 %v347
    %v364 = vunpack.c.l.b16 %v348
    %v365 = vunpack.c.h.b16 %v345
    %v366 = vunpack.c.h.b16 %v346
    %v367 = vunpack.c.h.b16 %v347
    %v368 = vunpack.c.h.b16 %v348
    %v369 = vunpack.c.l.b16 %v349
    %v370 = vunpack.c.l.b16 %v350
    %v371 = vunpack.c.l.b16 %v351
    %v372 = vunpack.c.l.b16 %v352
    %v373 = vunpack.c.h.b16 %v349
    %v374 = vunpack.c.h.b16 %v350
    %v375 = vunpack.c.h.b16 %v351
    %v376 = vunpack.c.h.b16 %v352
    %v377 = vpack.c.b16 %v362, %v361
    %v378 = vpack.c.b16 %v364, %v363
    %v379 = vpack.c.b16 %v366, %v365
    %v380 = vpack.c.b16 %v368, %v367
    %v381 = vpack.c.b16 %v370, %v369
    %v382 = vpack.c.b16 %v372, %v371
    %v383 = vpack.c.b16 %v374, %v373
    %v384 = vpack.c.b16 %v376, %v375
    %393 = vst [vmem:[#allocation5] sm:$0xff] %v377
    %394 = vst [vmem:[#allocation5 + $0x8] sm:$0xff] %v378
    %395 = vst [vmem:[#allocation5 + $0x10] sm:$0xff] %v379
    %396 = vst [vmem:[#allocation5 + $0x18] sm:$0xff] %v380
    %397 = vst [vmem:[#allocation5 + $0x20] sm:$0xff] %v381
    %398 = vst [vmem:[#allocation5 + $0x28] sm:$0xff] %v382
    %399 = vst [vmem:[#allocation5 + $0x30] sm:$0xff] %v383
    %400 = vst [vmem:[#allocation5 + $0x38] sm:$0xff] %v384
    // Predicated region
    $region22: #{tpu_custom_call.1} parent=1 // pred_check
      _
    $region23: #{tpu_custom_call.1} parent=1 // pred_check_branch
      %402 = sbr.rel (0) target = $region25
    $region24: #{tpu_custom_call.1} parent=1 // pred_region
      %s404 = ssub.s32 1024, 1024
      %405 = vsyncadd [#allocation4], %s404
      %s406 = sshll.u32 [#allocation5], 4
      %s407 = int_to_ptr.vmem [resolvable:$true] %s406
      %412 = dma.vmem_to_hbm [thread:$0]  %s407, 1024, %s4, [#allocation4], 256, 256, 16
    $region25: #{tpu_custom_call.1} parent=1 // pred_fallthru
      _
    // Predicated region
    $region26: #{tpu_custom_call.1} parent=1 // pred_check
      _
    $region27: #{tpu_custom_call.1} parent=1 // pred_check_branch
      %414 = sbr.rel (0) target = $region29
    $region28: #{tpu_custom_call.1} parent=1 // pred_region
      %415 = dma.done [#allocation4], 1024
    $region29: #{tpu_custom_call.1} parent=1 // pred_fallthru
      _
    %416 = vsyncpa [#allocation3], 1
    %417 = vsyncpa [#allocation4], 1

</llo_original>
